<compile_context>
chip_gen: v7x
topology: tpu7x:2x2x1
jax: 0.10.0
libtpu: 0.0.40
codegen_flags: <defaults>
</compile_context>

<pallas_src>
import functools

import jax
import jax.numpy as jnp
from jax.experimental import pallas as pl
from jax.experimental.pallas import tpu as pltpu

NUM_CLASSES = 56
_TILE_N_MAX = 8192                 # rows/step: 8192*56*4B ~= 1.75 MiB per f32 buffer
_VMEM_LIMIT_BYTES = 32 * 1024 * 1024


def _round_up(x, m):
    return (x + m - 1) // m * m


def _ce_kernel(logits_ref, label_ref, partial_ref, *, tile_n, n_valid):
    """One tile: partial sum of NLL = logsumexp(x) - x[label] over valid rows."""
    x = logits_ref[...].astype(jnp.float32)                  # (tile_n, C)
    lbl = label_ref[...]                                      # (tile_n, 1) int32

    # numerically stable log-softmax on z = x - max(x)
    m = jnp.max(x, axis=-1, keepdims=True)                    # (tile_n, 1)
    z = x - m
    lse_z = jnp.log(jnp.sum(jnp.exp(z), axis=-1, keepdims=True))  # (tile_n, 1)

    # gather the target logit in z-space via one-hot select (no dynamic gather);
    # the +m / -m terms cancel in (lse_z + m) - (picked_z + m).
    col = jax.lax.broadcasted_iota(jnp.int32, z.shape, 1)      # (tile_n, C)
    picked_z = jnp.sum(jnp.where(col == lbl, z, 0.0), axis=-1, keepdims=True)

    nll = lse_z - picked_z                                     # (tile_n, 1)

    # mask rows beyond the true row count (partial trailing tile reads garbage)
    row = (pl.program_id(0) * tile_n
           + jax.lax.broadcasted_iota(jnp.int32, nll.shape, 0))
    nll = jnp.where(row < n_valid, nll, 0.0)

    # lane-dense, unmasked store of this tile's partial sum
    s = jnp.sum(nll)
    partial_ref[...] = jnp.broadcast_to(s, partial_ref.shape)


def cross_entropy_loss(logits, label):
    """logits: (..., 56) float (f32 or bf16), label: (...) int -> scalar f32 loss."""
    # TODO(synk): torch.nn.CrossEntropyLoss's ignore_index=-100 is not replicated;
    #             all labels are assumed to be valid class ids in [0, 56).
    logits2d = logits.reshape(-1, NUM_CLASSES)   # keep native dtype (bf16 ok)
    label2d = label.reshape(-1, 1).astype(jnp.int32)
    n = logits2d.shape[0]

    tile_n = min(_TILE_N_MAX, _round_up(n, 8))
    num_tiles = pl.cdiv(n, tile_n)

    kernel = functools.partial(_ce_kernel, tile_n=tile_n, n_valid=n)
    partials = pl.pallas_call(
        kernel,
        out_shape=jax.ShapeDtypeStruct((num_tiles, 8, 128), jnp.float32),
        grid=(num_tiles,),
        in_specs=[
            pl.BlockSpec((tile_n, NUM_CLASSES), lambda i: (i, 0)),
            pl.BlockSpec((tile_n, 1), lambda i: (i, 0)),
        ],
        out_specs=pl.BlockSpec((1, 8, 128), lambda i: (i, 0, 0)),
        compiler_params=pltpu.CompilerParams(
            dimension_semantics=("parallel",),
            vmem_limit_bytes=_VMEM_LIMIT_BYTES,
        ),
    )(logits2d, label2d)

    # every element of a tile's (8,128) slab holds the same partial sum;
    # take one scalar per tile, tree-reduce in f32, then take the mean.
    return jnp.sum(partials[:, 0, 0]) / jnp.float32(n)


if __name__ == "__main__":
    key = jax.random.PRNGKey(0)
    k_logits, k_label = jax.random.split(key)

    batch, seq = 2, 8  # N = 16 samples, 56 classes
    logits = jax.random.normal(k_logits, (batch, seq, NUM_CLASSES), dtype=jnp.float32)
    label = jax.random.randint(k_label, (batch, seq), 0, NUM_CLASSES, dtype=jnp.int32)

    loss = cross_entropy_loss(logits, label)
    jax.block_until_ready(loss)

    # reference check in plain JAX
    lg = logits.reshape(-1, NUM_CLASSES)
    lb = label.reshape(-1)
    ref = jnp.mean(
        jax.nn.logsumexp(lg, axis=-1) - lg[jnp.arange(lg.shape[0]), lb]
    )
    assert jnp.allclose(loss, ref, atol=1e-5, rtol=1e-5), (loss, ref)

    print("KERNEL_OK")
</pallas_src>

<mosaic_0001>
module attributes {stable_mosaic.version = 11 : i64} {
  func.func @_ce_kernel(%arg0: i32, %arg1: memref<16x56xf32, #tpu.memory_space<vmem>>, %arg2: memref<16x1xi32, #tpu.memory_space<vmem>>, %arg3: memref<1x8x128xf32, #tpu.memory_space<vmem>>) attributes {dimension_semantics = [#tpu.dimension_semantics<parallel>], iteration_bounds = array<i64: 1>, scalar_prefetch = 0 : i64, scratch_operands = 0 : i64, tpu.core_type = #tpu.core_type<tc>, window_params = [{transform_indices = @transform_0, window_bounds = array<i64: 16, 56>}, {transform_indices = @transform_1, window_bounds = array<i64: 16, 1>}, {transform_indices = @transform_2, window_bounds = array<i64: 1, 8, 128>}]} {
    %c0 = arith.constant 0 : index
    %c0_0 = arith.constant 0 : index
    %0 = vector.load %arg1[%c0, %c0_0] : memref<16x56xf32, #tpu.memory_space<vmem>>, vector<16x56xf32>
    %c0_1 = arith.constant 0 : index
    %c0_2 = arith.constant 0 : index
    %1 = vector.load %arg2[%c0_1, %c0_2] : memref<16x1xi32, #tpu.memory_space<vmem>>, vector<16x1xi32>
    %cst = arith.constant dense<0xFF800000> : vector<16xf32>
    %2 = vector.multi_reduction <maximumf>, %0, %cst [1] : vector<16x56xf32> to vector<16xf32>
    %3 = vector.shape_cast %2 : vector<16xf32> to vector<16x1xf32>
    %4 = vector.broadcast %3 : vector<16x1xf32> to vector<16x56xf32>
    %5 = arith.subf %0, %4 : vector<16x56xf32>
    %6 = math.exp %5 : vector<16x56xf32>
    %cst_3 = arith.constant dense<0.000000e+00> : vector<16xf32>
    %7 = vector.multi_reduction <add>, %6, %cst_3 [1] : vector<16x56xf32> to vector<16xf32>
    %8 = vector.shape_cast %7 : vector<16xf32> to vector<16x1xf32>
    %9 = math.log %8 : vector<16x1xf32>
    %10 = tpu.iota {dimensions = array<i32: 1>} : vector<16x56xi32>
    %11 = vector.broadcast %1 : vector<16x1xi32> to vector<16x56xi32>
    %12 = arith.cmpi eq, %10, %11 : vector<16x56xi32>
    %cst_4 = arith.constant 0.000000e+00 : f32
    %13 = vector.broadcast %cst_4 : f32 to vector<16x56xf32>
    %14 = arith.select %12, %5, %13 : vector<16x56xi1>, vector<16x56xf32>
    %cst_5 = arith.constant dense<0.000000e+00> : vector<16xf32>
    %15 = vector.multi_reduction <add>, %14, %cst_5 [1] : vector<16x56xf32> to vector<16xf32>
    %16 = vector.shape_cast %15 : vector<16xf32> to vector<16x1xf32>
    %17 = arith.subf %9, %16 : vector<16x1xf32>
    %c16_i32 = arith.constant 16 : i32
    %18 = arith.muli %arg0, %c16_i32 : i32
    %19 = tpu.iota {dimensions = array<i32: 0>} : vector<16x1xi32>
    %20 = vector.broadcast %18 : i32 to vector<16x1xi32>
    %21 = arith.addi %20, %19 : vector<16x1xi32>
    %c16_i32_6 = arith.constant 16 : i32
    %22 = vector.broadcast %c16_i32_6 : i32 to vector<16x1xi32>
    %23 = arith.cmpi slt, %21, %22 : vector<16x1xi32>
    %cst_7 = arith.constant 0.000000e+00 : f32
    %24 = vector.broadcast %cst_7 : f32 to vector<16x1xf32>
    %25 = arith.select %23, %17, %24 : vector<16x1xi1>, vector<16x1xf32>
    %26 = vector.shape_cast %25 : vector<16x1xf32> to vector<1x16x1xf32>
    %cst_8 = arith.constant dense<0.000000e+00> : vector<1xf32>
    %27 = vector.multi_reduction <add>, %26, %cst_8 [1, 2] : vector<1x16x1xf32> to vector<1xf32>
    %28 = vector.shape_cast %27 : vector<1xf32> to vector<1x1x1xf32>
    %29 = vector.extract %28[0, 0, 0] : f32 from vector<1x1x1xf32>
    %30 = vector.broadcast %29 : f32 to vector<1x8x128xf32>
    %c0_9 = arith.constant 0 : index
    %c0_10 = arith.constant 0 : index
    %c0_11 = arith.constant 0 : index
    %31 = vector.load %arg3[%c0_9, %c0_10, %c0_11] : memref<1x8x128xf32, #tpu.memory_space<vmem>>, vector<1x8x128xf32>
    tpu.vector_store %arg3[%c0_9, %c0_10, %c0_11], %30 {strides = array<i32>} : memref<1x8x128xf32, #tpu.memory_space<vmem>>, vector<1x8x128xf32>,
    return
  }
  func.func @transform_0(%arg0: i32) -> (i32, i32) {
    %c0_i32 = arith.constant 0 : i32
    %c0_i32_0 = arith.constant 0 : i32
    return %arg0, %c0_i32 : i32, i32
  }
  func.func @transform_1(%arg0: i32) -> (i32, i32) {
    %c0_i32 = arith.constant 0 : i32
    %c0_i32_0 = arith.constant 0 : i32
    return %arg0, %c0_i32 : i32, i32
  }
  func.func @transform_2(%arg0: i32) -> (i32, i32, i32) {
    %c0_i32 = arith.constant 0 : i32
    %c0_i32_0 = arith.constant 0 : i32
    %c0_i32_1 = arith.constant 0 : i32
    return %arg0, %c0_i32, %c0_i32_0 : i32, i32, i32
  }
}

</mosaic_0001>

<llo_original>
// kernel: tpu_custom_call.1
$region0: #{tpu_custom_call.1}
  #allocation0 [shape = 'u32[]', space=smem, size = 0x4, offset = 0x4, fixed_abs, tag = 'smem constant byte address 0x4 - core index']
  #allocation1 [shape = 'u32[144,128]{1,0:T(1,128)}', space=vmem, size = 0x12000, scoped, tag = 'internal scratch']
  %s0 = inlined_call_operand.vmem [shape: f32[16,56], index: 0, kind: input, shape index: {}]
  %s1 = inlined_call_operand.vmem [shape: s32[16,1], index: 1, kind: input, shape index: {}]
  %s2 = inlined_call_operand.hbm [shape: f32[1,8,128], index: 2, kind: output, shape index: {}]
  %s3 = sld [smem:[#allocation0]]
  $region18: #{tpu_custom_call.1} parent=0
    _
  %s5 = ssub.s32 1, %s3
  %s6 = scalar_select 0, %s5, %s3
  $region1: #{tpu_custom_call.1} parent=0
    #allocation2 [shape = 'u8[4096]{0}', space=vmem, size = 0x1000, scoped, tag = 'output window, operand 0, single buffered']
    #allocation3 [shape = 's32[1]{0}', space=sflag, size = 0x4, scoped, tag = 'scoped memory for tpu_custom_call.1']
    %7 = vsyncpa [#allocation3], 0
    // Predicated region
    $region2: #{tpu_custom_call.1} parent=1 // pred_check
      _
    $region3: #{tpu_custom_call.1} parent=1 // pred_check_branch
      %9 = sbr.rel (0) target = $region5
    $region4: #{tpu_custom_call.1} parent=1 // pred_region
      _
    $region5: #{tpu_custom_call.1} parent=1 // pred_fallthru
      _
    // Predicated region
    $region6: #{tpu_custom_call.1} parent=1 // pred_check
      _
    $region7: #{tpu_custom_call.1} parent=1 // pred_check_branch
      %11 = sbr.rel (0) target = $region9
    $region8: #{tpu_custom_call.1} parent=1 // pred_region
      _
    $region9: #{tpu_custom_call.1} parent=1 // pred_fallthru
      _
    %v12 = vld [vmem:[%s0] sm:$0xff]
    %v13 = vld [vmem:[%s0 + $0x8] sm:$0xff]
    %v14 = vld [vmem:[%s1] sm:$0xff]
    %v15 = vld [vmem:[%s1 + $0x8] sm:$0xff]
    %vm16 = vcmask 457728
    %v17 = vsel %vm16, %v12, -inf
    %18 = vmax.xlane.f32.xlu0 %v17
    %v19 = vpop.xlane.xlu0 %18
    %v20 = vsel %vm16, %v13, -inf
    %21 = vmax.xlane.f32.xlu0 %v20
    %v22 = vpop.xlane.xlu0 %21
    %v23 = vsub.f32 %v12, %v19
    %v24 = vsub.f32 %v13, %v22
    %v25 = vmul.f32 %v23, 1.442695
    %v26 = vpow.pop %v25
    %v27 = vmul.f32 %v24, 1.442695
    %v28 = vpow.pop %v27
    %v29 = vsel %vm16, %v26, 0.0
    %30 = vadd.xlane.f32.xlu0 %v29
    %v31 = vpop.xlane.xlu0 %30
    %v32 = vsel %vm16, %v28, 0.0
    %33 = vadd.xlane.f32.xlu0 %v32
    %v34 = vpop.xlane.xlu0 %33
    %v35 = vlog2.pop %v31
    %v36 = vmul.f32 %v35, 0.6931472
    %v37 = vlog2.pop %v34
    %v38 = vmul.f32 %v37, 0.6931472
    %v39 = vlaneseq
    %v40 = vand.u32 %v39, 127
    %41 = vset.pattern.permute.xlu0 0
    %42 = vperm.xlu0 %41, %v14
    %v43 = vpop.permute.xlu0 %42
    %44 = vset.pattern.permute.xlu0 0
    %45 = vperm.xlu0 %44, %v15
    %v46 = vpop.permute.xlu0 %45
    %vm47 = vcmp.eq.s32.totalorder %v40, %v43
    %vm48 = vcmp.eq.s32.totalorder %v40, %v46
    %v49 = vsel %vm47, %v23, 0.0
    %v50 = vsel %vm48, %v24, 0.0
    %v51 = vsel %vm16, %v49, 0.0
    %52 = vadd.xlane.f32.xlu0 %v51
    %v53 = vpop.xlane.xlu0 %52
    %v54 = vsel %vm16, %v50, 0.0
    %55 = vadd.xlane.f32.xlu0 %v54
    %v56 = vpop.xlane.xlu0 %55
    %v57 = vsub.f32 %v36, %v53
    %v58 = vsub.f32 %v38, %v56
    %s59 = smul.u32 0, 16
    %v60 = vlaneseq
    %v61 = vshrl.u32 %v60, 7
    %v62 = vadd.s32 %v61, 8
    %v63 = vstv %s59
    %v64 = vadd.s32 %v63, %v61
    %v65 = vadd.s32 %v63, %v62
    %vm66 = vcmp.lt.s32.totalorder %v64, 16
    %vm67 = vcmp.lt.s32.totalorder %v65, 16
    %v68 = vsel %vm66, %v57, 0.0
    %v69 = vsel %vm67, %v58, 0.0
    %vm70 = vcmask 7168
    %v71 = vsel %vm70, %v68, 0.0
    %v72 = vsel %vm70, %v69, 0.0
    %v73 = vadd.f32 %v71, %v72
    %74 = vadd.xlane.f32.xlu0 %v73
    %v75 = vpop.xlane.xlu0 %74
    %v76 = vrot.slane %v75, 4
    %v77 = vadd.f32 %v75, %v76
    %v78 = vrot.slane %v77, 2
    %v79 = vadd.f32 %v77, %v78
    %v80 = vrot.slane %v79, 1
    %v81 = vadd.f32 %v79, %v80
    %s82 = vtos %v81
    %v83 = vstv %s82
    %84 = vst [vmem:[#allocation2] sm:$0xff] %v83
    // Predicated region
    $region10: #{tpu_custom_call.1} parent=1 // pred_check
      _
    $region11: #{tpu_custom_call.1} parent=1 // pred_check_branch
      %86 = sbr.rel (0) target = $region13
    $region12: #{tpu_custom_call.1} parent=1 // pred_region
      %s88 = ssub.s32 128, 128
      %89 = vsyncadd [#allocation3], %s88
      %s91 = sshll.u32 [#allocation2], 4
      %s92 = int_to_ptr.vmem [resolvable:$true] %s91
      %94 = dma.vmem_to_hbm [thread:$0]  %s92, 128, %s2, [#allocation3]
    $region13: #{tpu_custom_call.1} parent=1 // pred_fallthru
      _
    // Predicated region
    $region14: #{tpu_custom_call.1} parent=1 // pred_check
      _
    $region15: #{tpu_custom_call.1} parent=1 // pred_check_branch
      %96 = sbr.rel (0) target = $region17
    $region16: #{tpu_custom_call.1} parent=1 // pred_region
      %97 = dma.done [#allocation3], 128
    $region17: #{tpu_custom_call.1} parent=1 // pred_fallthru
      _
    %98 = vsyncpa [#allocation3], 1

</llo_original>
